<compile_context>
chip_gen: v7x
topology: tpu7x:2x2x1
jax: 0.10.0
libtpu: 0.0.40
codegen_flags: <defaults>
</compile_context>

<pallas_src>
import functools
import math

import jax
import jax.numpy as jnp
from jax import lax
from jax.experimental import pallas as pl
from jax.experimental.pallas import tpu as pltpu

_LANE = 128
_SUBLANE = 8
_MAX_BLOCK_ROWS = 64                     # rows gathered per grid step (32-bit rows)
_TILE_BUDGET_BYTES = 2 * 1024 * 1024     # cap for one (G, d_pad) f32/u32 tile
_DEFAULT_VMEM_CAPACITY = 64 * 1024 * 1024  # v7x-conservative fallback


def _round_up(x: int, m: int) -> int:
    return (x + m - 1) // m * m


def _vmem_capacity_bytes() -> int:
    """Generation-aware VMEM capacity (128 MiB v5e/v6e, 64 MiB v7x)."""
    try:
        cap = int(pltpu.get_tpu_info().vmem_capacity_bytes)
        if cap > 0:
            return cap
    except Exception:
        pass
    return _DEFAULT_VMEM_CAPACITY


def _packed_layout(tensor_shape, dtype):
    """Feature width (d), its 32-bit-word width (d32) and lane-padded width."""
    trailing = tuple(tensor_shape[1:])
    d = math.prod(trailing) if trailing else 1
    itemsize = jnp.dtype(dtype).itemsize
    if itemsize == 4:
        d32 = d
    elif itemsize < 4:
        per32 = 4 // itemsize
        d32 = _round_up(d, per32) // per32
    else:  # 64-bit dtypes -> 2 words per element
        d32 = d * (itemsize // 4)
    d_pad = max(_LANE, _round_up(d32, _LANE))
    return d, d32, d_pad


# ----------------------------------------------------------------------------
# Kernels (operate on 32-bit rows only).
# ----------------------------------------------------------------------------

def _make_resident_gather_kernel(block_rows: int, d_valid: int):
    """Source resident in VMEM; gather rows with dynamic sublane slices."""

    def kernel(idx_ref, x_ref, o_ref):
        # idx_ref: (m_pad,) int32 scalar-prefetch in SMEM
        # x_ref:   (n, d_valid) VMEM -- whole source, resident across the grid
        # o_ref:   (block_rows, d_pad) VMEM output tile
        base = pl.program_id(0) * block_rows
        for g in range(block_rows):
            row = idx_ref[base + g]
            o_ref[pl.ds(g, 1), pl.ds(0, d_valid)] = x_ref[pl.ds(row, 1), :]

    return kernel


def _make_dma_gather_kernel(block_rows: int, d_valid: int):
    """Source stays in HBM; per-row DMAs with cross-step (double-buffered)
    prefetch: step i issues step i+1's fetches before waiting on its own."""

    def kernel(idx_ref, x_hbm, o_ref, buf, sems):
        # idx_ref: (m_pad,) int32 scalar-prefetch in SMEM
        # x_hbm:   (n, d_valid) raw HBM ref (memory_space=pl.ANY)
        # o_ref:   (block_rows, d_pad) VMEM output tile
        # buf:     (2, block_rows, d_pad) VMEM double buffer
        # sems:    (2, block_rows) DMA semaphores
        step = pl.program_id(0)
        nsteps = pl.num_programs(0)

        def issue(s, slot):
            base = s * block_rows
            for g in range(block_rows):
                row = idx_ref[base + g]          # SMEM reads before any .wait()
                pltpu.make_async_copy(
                    x_hbm.at[pl.ds(row, 1), :],                      # (1, d) row
                    buf.at[slot, pl.ds(g, 1), pl.ds(0, d_valid)],    # (1, d) dst
                    sems.at[slot, g],
                ).start()

        @pl.when(step == 0)
        def _():
            issue(0, 0)                          # prime slot 0

        @pl.when(step + 1 < nsteps)
        def _():
            issue(step + 1, (step + 1) % 2)      # prefetch next block

        slot = step % 2
        for g in range(block_rows):              # wait for this block's rows
            pltpu.make_async_copy(
                x_hbm.at[pl.ds(0, 1), :],        # dummy src, same shape as start
                buf.at[slot, pl.ds(g, 1), pl.ds(0, d_valid)],
                sems.at[slot, g],
            ).wait()
        o_ref[...] = buf[slot]

    return kernel


# ----------------------------------------------------------------------------
# Wrapper
# ----------------------------------------------------------------------------

@functools.partial(
    jax.jit,
    static_argnames=("block_rows", "use_dma_path", "vmem_limit_bytes"))
def _selector_forward_impl(tensor, idx, *, block_rows, use_dma_path,
                           vmem_limit_bytes):
    n = tensor.shape[0]
    trailing = tuple(tensor.shape[1:])
    d = math.prod(trailing) if trailing else 1
    (m,) = idx.shape
    dtype = tensor.dtype
    itemsize = jnp.dtype(dtype).itemsize
    g = block_rows

    # --- re-express rows as 32-bit words (no full-source pad to 128 lanes) ---
    x2d = tensor.reshape(n, d)
    if itemsize == 4:
        x32, d32 = x2d, d
    elif itemsize < 4:
        per32 = 4 // itemsize
        d_even = _round_up(d, per32)
        if d_even != d:                          # at most 3 extra columns
            x2d = jnp.pad(x2d, ((0, 0), (0, d_even - d)))
        x32 = lax.bitcast_convert_type(
            x2d.reshape(n, d_even // per32, per32), jnp.uint32)
        d32 = d_even // per32
    else:                                        # 64-bit dtypes
        x32 = lax.bitcast_convert_type(x2d, jnp.uint32).reshape(n, 2 * d)
        d32 = 2 * d

    d_pad = max(_LANE, _round_up(d32, _LANE))
    m_pad = _round_up(m, g)

    # Clamp indices (OOB safety; torch would raise) and pad M up to the block.
    idx_p = jnp.clip(idx.astype(jnp.int32), 0, n - 1)
    if m_pad != m:
        idx_p = jnp.pad(idx_p, (0, m_pad - m))   # tail rows gather row 0

    grid = (m_pad // g,)
    kdtype = x32.dtype
    out_shape = jax.ShapeDtypeStruct((m_pad, d_pad), kdtype)
    out_spec = pl.BlockSpec((g, d_pad), lambda i, idx_ref: (i, 0))

    if use_dma_path:
        out32 = pl.pallas_call(
            _make_dma_gather_kernel(g, d32),
            out_shape=out_shape,
            grid_spec=pltpu.PrefetchScalarGridSpec(
                num_scalar_prefetch=1,
                grid=grid,
                in_specs=[pl.BlockSpec(memory_space=pl.ANY)],
                out_specs=out_spec,
                scratch_shapes=[
                    pltpu.VMEM((2, g, d_pad), kdtype),
                    pltpu.SemaphoreType.DMA((2, g)),
                ],
            ),
            compiler_params=pltpu.CompilerParams(
                # Cross-step double-buffer state => steps must run in order.
                dimension_semantics=("arbitrary",),
                vmem_limit_bytes=vmem_limit_bytes,
            ),
        )(idx_p, x32)
    else:
        out32 = pl.pallas_call(
            _make_resident_gather_kernel(g, d32),
            out_shape=out_shape,
            grid_spec=pltpu.PrefetchScalarGridSpec(
                num_scalar_prefetch=1,
                grid=grid,
                # Constant index_map: the (unpadded) source is DMA'd to VMEM
                # once and stays resident across all grid steps.
                in_specs=[pl.BlockSpec((n, d32), lambda i, idx_ref: (0, 0))],
                out_specs=out_spec,
            ),
            compiler_params=pltpu.CompilerParams(
                dimension_semantics=("parallel",),
                vmem_limit_bytes=vmem_limit_bytes,
            ),
        )(idx_p, x32)

    out32 = out32[:m, :d32]

    # --- unpack back to the original dtype / trailing shape -----------------
    if itemsize == 4:
        out2d = out32
    elif itemsize < 4:
        per32 = 4 // itemsize
        out2d = lax.bitcast_convert_type(out32, dtype)
        out2d = out2d.reshape(m, d32 * per32)[:, :d]
    else:
        out2d = lax.bitcast_convert_type(out32.reshape(m, d, 2), dtype)

    return out2d.reshape((m,) + trailing)


def selector_forward(tensor: jax.Array, idx: jax.Array, *, force_dma_path=None):
    """Pallas equivalent of `tensor[idx]` (gather along axis 0)."""
    assert idx.ndim == 1, "Selector idx must be 1-D"
    n = tensor.shape[0]
    (m,) = idx.shape
    if m == 0:
        return jnp.zeros((0,) + tuple(tensor.shape[1:]), tensor.dtype)

    d, d32, d_pad = _packed_layout(tensor.shape, tensor.dtype)

    # Rows per grid step: amortize the per-step overhead, keep many DMAs in
    # flight, but bound one (G, d_pad) 32-bit tile to ~2 MiB of VMEM.
    g = min(_MAX_BLOCK_ROWS,
            max(_SUBLANE,
                (_TILE_BUDGET_BYTES // (d_pad * 4)) // _SUBLANE * _SUBLANE))

    cap = _vmem_capacity_bytes()
    vmem_target = (3 * cap) // 4                       # leave headroom

    out_tiles_bytes = 2 * g * d_pad * 4                # double-buffered output
    src_block_bytes = _round_up(n, _SUBLANE) * d_pad * 4   # VMEM-padded source
    resident_bytes = 2 * src_block_bytes + out_tiles_bytes + (2 << 20)
    fits_vmem = resident_bytes <= vmem_target

    src_hbm_bytes = n * d32 * 4
    gathered_bytes = max(m, 1) * d32 * 4
    if force_dma_path is None:
        # Prefer the one dense (near-peak-bandwidth) transfer unless the
        # source is both large in absolute terms and much larger than the
        # gathered output; per-row DMAs are descriptor/latency bound.
        use_dma_path = not (fits_vmem and
                            (src_hbm_bytes <= 8 * gathered_bytes
                             or src_hbm_bytes <= (4 << 20)))
    else:
        use_dma_path = bool(force_dma_path)

    if use_dma_path:
        needed = 2 * (2 * g * d_pad * 4) + (4 << 20)
    else:
        needed = resident_bytes + (4 << 20)
    vmem_limit_bytes = int(min(vmem_target, max(needed, 32 << 20)))

    return _selector_forward_impl(
        tensor, idx, block_rows=g, use_dma_path=use_dma_path,
        vmem_limit_bytes=vmem_limit_bytes)


class SelectorPallas:
    """Minimal stand-in for easier.Selector: holds `idx`, forward = gather.

    The distributed machinery (elempart partitioning, halo exchange,
    compile()-time idx rewriting, .to()/collect()/save()) has no single-device
    Pallas equivalent; only the runtime forward gather is implemented here.
    """

    def __init__(self, idx: jax.Array):
        self.idx = idx.astype(jnp.int32)

    def __call__(self, tensor: jax.Array) -> jax.Array:
        return selector_forward(tensor, self.idx)


if __name__ == "__main__":
    key = jax.random.PRNGKey(0)
    k1, k2, k3, k4, k5, k6 = jax.random.split(key, 6)

    # Case 1: f32, lane-aligned trailing dims (D = 4*32 = 128).
    N1, C1, F1, M1 = 64, 4, 32, 24
    x1 = jax.random.normal(k1, (N1, C1, F1), dtype=jnp.float32)
    idx1 = jax.random.randint(k2, (M1,), 0, N1, dtype=jnp.int32)
    ref1 = x1[idx1]
    sel1 = SelectorPallas(idx1)
    out1 = jax.block_until_ready(sel1(x1))                             # resident
    out1_dma = jax.block_until_ready(
        selector_forward(x1, idx1, force_dma_path=True))               # manual DMA
    assert out1.shape == (M1, C1, F1) and out1.dtype == x1.dtype
    assert jnp.array_equal(out1, ref1), "resident gather mismatch (case 1)"
    assert jnp.array_equal(out1_dma, ref1), "DMA gather mismatch (case 1)"

    # Case 2: f32, non-lane-multiple trailing dims (D = 3*10 = 30) and M not a
    # multiple of the row block (exercises idx/output padding & lane masking).
    N2, C2, F2, M2 = 50, 3, 10, 21
    x2 = jax.random.normal(k3, (N2, C2, F2), dtype=jnp.float32)
    idx2 = jax.random.randint(k4, (M2,), 0, N2, dtype=jnp.int32)
    ref2 = x2[idx2]
    out2 = jax.block_until_ready(selector_forward(x2, idx2))
    out2_dma = jax.block_until_ready(
        selector_forward(x2, idx2, force_dma_path=True))
    assert out2.shape == (M2, C2, F2) and out2.dtype == x2.dtype
    assert jnp.array_equal(out2, ref2), "resident gather mismatch (case 2)"
    assert jnp.array_equal(out2_dma, ref2), "DMA gather mismatch (case 2)"

    # Case 3: bf16 with an odd feature width (packed 2-per-32-bit-lane).
    N3, F3, M3 = 40, 15, 33
    x3 = jax.random.normal(k5, (N3, F3), dtype=jnp.float32).astype(jnp.bfloat16)
    idx3 = jax.random.randint(k6, (M3,), 0, N3, dtype=jnp.int32)
    ref3 = x3[idx3]
    out3 = jax.block_until_ready(selector_forward(x3, idx3))
    out3_dma = jax.block_until_ready(
        selector_forward(x3, idx3, force_dma_path=True))
    assert out3.shape == (M3, F3) and out3.dtype == jnp.bfloat16
    assert jnp.array_equal(out3, ref3), "resident gather mismatch (bf16)"
    assert jnp.array_equal(out3_dma, ref3), "DMA gather mismatch (bf16)"

    # Case 4: 1-D int32 field (d == 1).
    x4 = jnp.arange(37, dtype=jnp.int32) * 3 + 1
    idx4 = idx3 % 37
    ref4 = x4[idx4]
    out4 = jax.block_until_ready(selector_forward(x4, idx4))
    assert out4.shape == (M3,) and out4.dtype == jnp.int32
    assert jnp.array_equal(out4, ref4), "resident gather mismatch (1-D)"

    print("KERNEL_OK")
</pallas_src>

<mosaic_0001>
module attributes {stable_mosaic.version = 11 : i64} {
  func.func @kernel(%arg0: i32, %arg1: memref<64xi32, #tpu.memory_space<smem>>, %arg2: memref<64x128xf32, #tpu.memory_space<vmem>>, %arg3: memref<64x128xf32, #tpu.memory_space<vmem>>) attributes {dimension_semantics = [#tpu.dimension_semantics<parallel>], iteration_bounds = array<i64: 1>, scalar_prefetch = 1 : i64, scratch_operands = 0 : i64, tpu.core_type = #tpu.core_type<tc>, window_params = [{pipeline_mode = #tpu.pipeline_mode<synchronous>, transform_indices = @transform_0, window_bounds = array<i64: 64, 128>}, {transform_indices = @transform_1, window_bounds = array<i64: 64, 128>}]} {
    %c64_i32 = arith.constant 64 : i32
    %0 = arith.muli %arg0, %c64_i32 : i32
    %c0_i32 = arith.constant 0 : i32
    %1 = arith.addi %0, %c0_i32 : i32
    %2 = arith.index_cast %1 : i32 to index
    %3 = memref.load %arg1[%2] : memref<64xi32, #tpu.memory_space<smem>>
    %4 = arith.index_cast %3 : i32 to index
    %c0 = arith.constant 0 : index
    %5 = vector.load %arg2[%4, %c0] : memref<64x128xf32, #tpu.memory_space<vmem>>, vector<1x128xf32>
    %c0_0 = arith.constant 0 : index
    %c0_1 = arith.constant 0 : index
    %6 = vector.load %arg3[%c0_0, %c0_1] : memref<64x128xf32, #tpu.memory_space<vmem>>, vector<1x128xf32>
    tpu.vector_store %arg3[%c0_0, %c0_1], %5 {strides = array<i32>} : memref<64x128xf32, #tpu.memory_space<vmem>>, vector<1x128xf32>,
    %c1_i32 = arith.constant 1 : i32
    %7 = arith.addi %0, %c1_i32 : i32
    %8 = arith.index_cast %7 : i32 to index
    %9 = memref.load %arg1[%8] : memref<64xi32, #tpu.memory_space<smem>>
    %10 = arith.index_cast %9 : i32 to index
    %c0_2 = arith.constant 0 : index
    %11 = vector.load %arg2[%10, %c0_2] : memref<64x128xf32, #tpu.memory_space<vmem>>, vector<1x128xf32>
    %c1 = arith.constant 1 : index
    %c0_3 = arith.constant 0 : index
    %12 = vector.load %arg3[%c1, %c0_3] : memref<64x128xf32, #tpu.memory_space<vmem>>, vector<1x128xf32>
    tpu.vector_store %arg3[%c1, %c0_3], %11 {strides = array<i32>} : memref<64x128xf32, #tpu.memory_space<vmem>>, vector<1x128xf32>,
    %c2_i32 = arith.constant 2 : i32
    %13 = arith.addi %0, %c2_i32 : i32
    %14 = arith.index_cast %13 : i32 to index
    %15 = memref.load %arg1[%14] : memref<64xi32, #tpu.memory_space<smem>>
    %16 = arith.index_cast %15 : i32 to index
    %c0_4 = arith.constant 0 : index
    %17 = vector.load %arg2[%16, %c0_4] : memref<64x128xf32, #tpu.memory_space<vmem>>, vector<1x128xf32>
    %c2 = arith.constant 2 : index
    %c0_5 = arith.constant 0 : index
    %18 = vector.load %arg3[%c2, %c0_5] : memref<64x128xf32, #tpu.memory_space<vmem>>, vector<1x128xf32>
    tpu.vector_store %arg3[%c2, %c0_5], %17 {strides = array<i32>} : memref<64x128xf32, #tpu.memory_space<vmem>>, vector<1x128xf32>,
    %c3_i32 = arith.constant 3 : i32
    %19 = arith.addi %0, %c3_i32 : i32
    %20 = arith.index_cast %19 : i32 to index
    %21 = memref.load %arg1[%20] : memref<64xi32, #tpu.memory_space<smem>>
    %22 = arith.index_cast %21 : i32 to index
    %c0_6 = arith.constant 0 : index
    %23 = vector.load %arg2[%22, %c0_6] : memref<64x128xf32, #tpu.memory_space<vmem>>, vector<1x128xf32>
    %c3 = arith.constant 3 : index
    %c0_7 = arith.constant 0 : index
    %24 = vector.load %arg3[%c3, %c0_7] : memref<64x128xf32, #tpu.memory_space<vmem>>, vector<1x128xf32>
    tpu.vector_store %arg3[%c3, %c0_7], %23 {strides = array<i32>} : memref<64x128xf32, #tpu.memory_space<vmem>>, vector<1x128xf32>,
    %c4_i32 = arith.constant 4 : i32
    %25 = arith.addi %0, %c4_i32 : i32
    %26 = arith.index_cast %25 : i32 to index
    %27 = memref.load %arg1[%26] : memref<64xi32, #tpu.memory_space<smem>>
    %28 = arith.index_cast %27 : i32 to index
    %c0_8 = arith.constant 0 : index
    %29 = vector.load %arg2[%28, %c0_8] : memref<64x128xf32, #tpu.memory_space<vmem>>, vector<1x128xf32>
    %c4 = arith.constant 4 : index
    %c0_9 = arith.constant 0 : index
    %30 = vector.load %arg3[%c4, %c0_9] : memref<64x128xf32, #tpu.memory_space<vmem>>, vector<1x128xf32>
    tpu.vector_store %arg3[%c4, %c0_9], %29 {strides = array<i32>} : memref<64x128xf32, #tpu.memory_space<vmem>>, vector<1x128xf32>,
    %c5_i32 = arith.constant 5 : i32
    %31 = arith.addi %0, %c5_i32 : i32
    %32 = arith.index_cast %31 : i32 to index
    %33 = memref.load %arg1[%32] : memref<64xi32, #tpu.memory_space<smem>>
    %34 = arith.index_cast %33 : i32 to index
    %c0_10 = arith.constant 0 : index
    %35 = vector.load %arg2[%34, %c0_10] : memref<64x128xf32, #tpu.memory_space<vmem>>, vector<1x128xf32>
    %c5 = arith.constant 5 : index
    %c0_11 = arith.constant 0 : index
    %36 = vector.load %arg3[%c5, %c0_11] : memref<64x128xf32, #tpu.memory_space<vmem>>, vector<1x128xf32>
    tpu.vector_store %arg3[%c5, %c0_11], %35 {strides = array<i32>} : memref<64x128xf32, #tpu.memory_space<vmem>>, vector<1x128xf32>,
    %c6_i32 = arith.constant 6 : i32
    %37 = arith.addi %0, %c6_i32 : i32
    %38 = arith.index_cast %37 : i32 to index
    %39 = memref.load %arg1[%38] : memref<64xi32, #tpu.memory_space<smem>>
    %40 = arith.index_cast %39 : i32 to index
    %c0_12 = arith.constant 0 : index
    %41 = vector.load %arg2[%40, %c0_12] : memref<64x128xf32, #tpu.memory_space<vmem>>, vector<1x128xf32>
    %c6 = arith.constant 6 : index
    %c0_13 = arith.constant 0 : index
    %42 = vector.load %arg3[%c6, %c0_13] : memref<64x128xf32, #tpu.memory_space<vmem>>, vector<1x128xf32>
    tpu.vector_store %arg3[%c6, %c0_13], %41 {strides = array<i32>} : memref<64x128xf32, #tpu.memory_space<vmem>>, vector<1x128xf32>,
    %c7_i32 = arith.constant 7 : i32
    %43 = arith.addi %0, %c7_i32 : i32
    %44 = arith.index_cast %43 : i32 to index
    %45 = memref.load %arg1[%44] : memref<64xi32, #tpu.memory_space<smem>>
    %46 = arith.index_cast %45 : i32 to index
    %c0_14 = arith.constant 0 : index
    %47 = vector.load %arg2[%46, %c0_14] : memref<64x128xf32, #tpu.memory_space<vmem>>, vector<1x128xf32>
    %c7 = arith.constant 7 : index
    %c0_15 = arith.constant 0 : index
    %48 = vector.load %arg3[%c7, %c0_15] : memref<64x128xf32, #tpu.memory_space<vmem>>, vector<1x128xf32>
    tpu.vector_store %arg3[%c7, %c0_15], %47 {strides = array<i32>} : memref<64x128xf32, #tpu.memory_space<vmem>>, vector<1x128xf32>,
    %c8_i32 = arith.constant 8 : i32
    %49 = arith.addi %0, %c8_i32 : i32
    %50 = arith.index_cast %49 : i32 to index
    %51 = memref.load %arg1[%50] : memref<64xi32, #tpu.memory_space<smem>>
    %52 = arith.index_cast %51 : i32 to index
    %c0_16 = arith.constant 0 : index
    %53 = vector.load %arg2[%52, %c0_16] : memref<64x128xf32, #tpu.memory_space<vmem>>, vector<1x128xf32>
    %c8 = arith.constant 8 : index
    %c0_17 = arith.constant 0 : index
    %54 = vector.load %arg3[%c8, %c0_17] : memref<64x128xf32, #tpu.memory_space<vmem>>, vector<1x128xf32>
    tpu.vector_store %arg3[%c8, %c0_17], %53 {strides = array<i32>} : memref<64x128xf32, #tpu.memory_space<vmem>>, vector<1x128xf32>,
    %c9_i32 = arith.constant 9 : i32
    %55 = arith.addi %0, %c9_i32 : i32
    %56 = arith.index_cast %55 : i32 to index
    %57 = memref.load %arg1[%56] : memref<64xi32, #tpu.memory_space<smem>>
    %58 = arith.index_cast %57 : i32 to index
    %c0_18 = arith.constant 0 : index
    %59 = vector.load %arg2[%58, %c0_18] : memref<64x128xf32, #tpu.memory_space<vmem>>, vector<1x128xf32>
    %c9 = arith.constant 9 : index
    %c0_19 = arith.constant 0 : index
    %60 = vector.load %arg3[%c9, %c0_19] : memref<64x128xf32, #tpu.memory_space<vmem>>, vector<1x128xf32>
    tpu.vector_store %arg3[%c9, %c0_19], %59 {strides = array<i32>} : memref<64x128xf32, #tpu.memory_space<vmem>>, vector<1x128xf32>,
    %c10_i32 = arith.constant 10 : i32
    %61 = arith.addi %0, %c10_i32 : i32
    %62 = arith.index_cast %61 : i32 to index
    %63 = memref.load %arg1[%62] : memref<64xi32, #tpu.memory_space<smem>>
    %64 = arith.index_cast %63 : i32 to index
    %c0_20 = arith.constant 0 : index
    %65 = vector.load %arg2[%64, %c0_20] : memref<64x128xf32, #tpu.memory_space<vmem>>, vector<1x128xf32>
    %c10 = arith.constant 10 : index
    %c0_21 = arith.constant 0 : index
    %66 = vector.load %arg3[%c10, %c0_21] : memref<64x128xf32, #tpu.memory_space<vmem>>, vector<1x128xf32>
    tpu.vector_store %arg3[%c10, %c0_21], %65 {strides = array<i32>} : memref<64x128xf32, #tpu.memory_space<vmem>>, vector<1x128xf32>,
    %c11_i32 = arith.constant 11 : i32
    %67 = arith.addi %0, %c11_i32 : i32
    %68 = arith.index_cast %67 : i32 to index
    %69 = memref.load %arg1[%68] : memref<64xi32, #tpu.memory_space<smem>>
    %70 = arith.index_cast %69 : i32 to index
    %c0_22 = arith.constant 0 : index
    %71 = vector.load %arg2[%70, %c0_22] : memref<64x128xf32, #tpu.memory_space<vmem>>, vector<1x128xf32>
    %c11 = arith.constant 11 : index
    %c0_23 = arith.constant 0 : index
    %72 = vector.load %arg3[%c11, %c0_23] : memref<64x128xf32, #tpu.memory_space<vmem>>, vector<1x128xf32>
    tpu.vector_store %arg3[%c11, %c0_23], %71 {strides = array<i32>} : memref<64x128xf32, #tpu.memory_space<vmem>>, vector<1x128xf32>,
    %c12_i32 = arith.constant 12 : i32
    %73 = arith.addi %0, %c12_i32 : i32
    %74 = arith.index_cast %73 : i32 to index
    %75 = memref.load %arg1[%74] : memref<64xi32, #tpu.memory_space<smem>>
    %76 = arith.index_cast %75 : i32 to index
    %c0_24 = arith.constant 0 : index
    %77 = vector.load %arg2[%76, %c0_24] : memref<64x128xf32, #tpu.memory_space<vmem>>, vector<1x128xf32>
    %c12 = arith.constant 12 : index
    %c0_25 = arith.constant 0 : index
    %78 = vector.load %arg3[%c12, %c0_25] : memref<64x128xf32, #tpu.memory_space<vmem>>, vector<1x128xf32>
    tpu.vector_store %arg3[%c12, %c0_25], %77 {strides = array<i32>} : memref<64x128xf32, #tpu.memory_space<vmem>>, vector<1x128xf32>,
    %c13_i32 = arith.constant 13 : i32
    %79 = arith.addi %0, %c13_i32 : i32
    %80 = arith.index_cast %79 : i32 to index
    %81 = memref.load %arg1[%80] : memref<64xi32, #tpu.memory_space<smem>>
    %82 = arith.index_cast %81 : i32 to index
    %c0_26 = arith.constant 0 : index
    %83 = vector.load %arg2[%82, %c0_26] : memref<64x128xf32, #tpu.memory_space<vmem>>, vector<1x128xf32>
    %c13 = arith.constant 13 : index
    %c0_27 = arith.constant 0 : index
    %84 = vector.load %arg3[%c13, %c0_27] : memref<64x128xf32, #tpu.memory_space<vmem>>, vector<1x128xf32>
    tpu.vector_store %arg3[%c13, %c0_27], %83 {strides = array<i32>} : memref<64x128xf32, #tpu.memory_space<vmem>>, vector<1x128xf32>,
    %c14_i32 = arith.constant 14 : i32
    %85 = arith.addi %0, %c14_i32 : i32
    %86 = arith.index_cast %85 : i32 to index
    %87 = memref.load %arg1[%86] : memref<64xi32, #tpu.memory_space<smem>>
    %88 = arith.index_cast %87 : i32 to index
    %c0_28 = arith.constant 0 : index
    %89 = vector.load %arg2[%88, %c0_28] : memref<64x128xf32, #tpu.memory_space<vmem>>, vector<1x128xf32>
    %c14 = arith.constant 14 : index
    %c0_29 = arith.constant 0 : index
    %90 = vector.load %arg3[%c14, %c0_29] : memref<64x128xf32, #tpu.memory_space<vmem>>, vector<1x128xf32>
    tpu.vector_store %arg3[%c14, %c0_29], %89 {strides = array<i32>} : memref<64x128xf32, #tpu.memory_space<vmem>>, vector<1x128xf32>,
    %c15_i32 = arith.constant 15 : i32
    %91 = arith.addi %0, %c15_i32 : i32
    %92 = arith.index_cast %91 : i32 to index
    %93 = memref.load %arg1[%92] : memref<64xi32, #tpu.memory_space<smem>>
    %94 = arith.index_cast %93 : i32 to index
    %c0_30 = arith.constant 0 : index
    %95 = vector.load %arg2[%94, %c0_30] : memref<64x128xf32, #tpu.memory_space<vmem>>, vector<1x128xf32>
    %c15 = arith.constant 15 : index
    %c0_31 = arith.constant 0 : index
    %96 = vector.load %arg3[%c15, %c0_31] : memref<64x128xf32, #tpu.memory_space<vmem>>, vector<1x128xf32>
    tpu.vector_store %arg3[%c15, %c0_31], %95 {strides = array<i32>} : memref<64x128xf32, #tpu.memory_space<vmem>>, vector<1x128xf32>,
    %c16_i32 = arith.constant 16 : i32
    %97 = arith.addi %0, %c16_i32 : i32
    %98 = arith.index_cast %97 : i32 to index
    %99 = memref.load %arg1[%98] : memref<64xi32, #tpu.memory_space<smem>>
    %100 = arith.index_cast %99 : i32 to index
    %c0_32 = arith.constant 0 : index
    %101 = vector.load %arg2[%100, %c0_32] : memref<64x128xf32, #tpu.memory_space<vmem>>, vector<1x128xf32>
    %c16 = arith.constant 16 : index
    %c0_33 = arith.constant 0 : index
    %102 = vector.load %arg3[%c16, %c0_33] : memref<64x128xf32, #tpu.memory_space<vmem>>, vector<1x128xf32>
    tpu.vector_store %arg3[%c16, %c0_33], %101 {strides = array<i32>} : memref<64x128xf32, #tpu.memory_space<vmem>>, vector<1x128xf32>,
    %c17_i32 = arith.constant 17 : i32
    %103 = arith.addi %0, %c17_i32 : i32
    %104 = arith.index_cast %103 : i32 to index
    %105 = memref.load %arg1[%104] : memref<64xi32, #tpu.memory_space<smem>>
    %106 = arith.index_cast %105 : i32 to index
    %c0_34 = arith.constant 0 : index
    %107 = vector.load %arg2[%106, %c0_34] : memref<64x128xf32, #tpu.memory_space<vmem>>, vector<1x128xf32>
    %c17 = arith.constant 17 : index
    %c0_35 = arith.constant 0 : index
    %108 = vector.load %arg3[%c17, %c0_35] : memref<64x128xf32, #tpu.memory_space<vmem>>, vector<1x128xf32>
    tpu.vector_store %arg3[%c17, %c0_35], %107 {strides = array<i32>} : memref<64x128xf32, #tpu.memory_space<vmem>>, vector<1x128xf32>,
    %c18_i32 = arith.constant 18 : i32
    %109 = arith.addi %0, %c18_i32 : i32
    %110 = arith.index_cast %109 : i32 to index
    %111 = memref.load %arg1[%110] : memref<64xi32, #tpu.memory_space<smem>>
    %112 = arith.index_cast %111 : i32 to index
    %c0_36 = arith.constant 0 : index
    %113 = vector.load %arg2[%112, %c0_36] : memref<64x128xf32, #tpu.memory_space<vmem>>, vector<1x128xf32>
    %c18 = arith.constant 18 : index
    %c0_37 = arith.constant 0 : index
    %114 = vector.load %arg3[%c18, %c0_37] : memref<64x128xf32, #tpu.memory_space<vmem>>, vector<1x128xf32>
    tpu.vector_store %arg3[%c18, %c0_37], %113 {strides = array<i32>} : memref<64x128xf32, #tpu.memory_space<vmem>>, vector<1x128xf32>,
    %c19_i32 = arith.constant 19 : i32
    %115 = arith.addi %0, %c19_i32 : i32
    %116 = arith.index_cast %115 : i32 to index
    %117 = memref.load %arg1[%116] : memref<64xi32, #tpu.memory_space<smem>>
    %118 = arith.index_cast %117 : i32 to index
    %c0_38 = arith.constant 0 : index
    %119 = vector.load %arg2[%118, %c0_38] : memref<64x128xf32, #tpu.memory_space<vmem>>, vector<1x128xf32>
    %c19 = arith.constant 19 : index
    %c0_39 = arith.constant 0 : index
    %120 = vector.load %arg3[%c19, %c0_39] : memref<64x128xf32, #tpu.memory_space<vmem>>, vector<1x128xf32>
    tpu.vector_store %arg3[%c19, %c0_39], %119 {strides = array<i32>} : memref<64x128xf32, #tpu.memory_space<vmem>>, vector<1x128xf32>,
    %c20_i32 = arith.constant 20 : i32
    %121 = arith.addi %0, %c20_i32 : i32
    %122 = arith.index_cast %121 : i32 to index
    %123 = memref.load %arg1[%122] : memref<64xi32, #tpu.memory_space<smem>>
    %124 = arith.index_cast %123 : i32 to index
    %c0_40 = arith.constant 0 : index
    %125 = vector.load %arg2[%124, %c0_40] : memref<64x128xf32, #tpu.memory_space<vmem>>, vector<1x128xf32>
    %c20 = arith.constant 20 : index
    %c0_41 = arith.constant 0 : index
    %126 = vector.load %arg3[%c20, %c0_41] : memref<64x128xf32, #tpu.memory_space<vmem>>, vector<1x128xf32>
    tpu.vector_store %arg3[%c20, %c0_41], %125 {strides = array<i32>} : memref<64x128xf32, #tpu.memory_space<vmem>>, vector<1x128xf32>,
    %c21_i32 = arith.constant 21 : i32
    %127 = arith.addi %0, %c21_i32 : i32
    %128 = arith.index_cast %127 : i32 to index
    %129 = memref.load %arg1[%128] : memref<64xi32, #tpu.memory_space<smem>>
    %130 = arith.index_cast %129 : i32 to index
    %c0_42 = arith.constant 0 : index
    %131 = vector.load %arg2[%130, %c0_42] : memref<64x128xf32, #tpu.memory_space<vmem>>, vector<1x128xf32>
    %c21 = arith.constant 21 : index
    %c0_43 = arith.constant 0 : index
    %132 = vector.load %arg3[%c21, %c0_43] : memref<64x128xf32, #tpu.memory_space<vmem>>, vector<1x128xf32>
    tpu.vector_store %arg3[%c21, %c0_43], %131 {strides = array<i32>} : memref<64x128xf32, #tpu.memory_space<vmem>>, vector<1x128xf32>,
    %c22_i32 = arith.constant 22 : i32
    %133 = arith.addi %0, %c22_i32 : i32
    %134 = arith.index_cast %133 : i32 to index
    %135 = memref.load %arg1[%134] : memref<64xi32, #tpu.memory_space<smem>>
    %136 = arith.index_cast %135 : i32 to index
    %c0_44 = arith.constant 0 : index
    %137 = vector.load %arg2[%136, %c0_44] : memref<64x128xf32, #tpu.memory_space<vmem>>, vector<1x128xf32>
    %c22 = arith.constant 22 : index
    %c0_45 = arith.constant 0 : index
    %138 = vector.load %arg3[%c22, %c0_45] : memref<64x128xf32, #tpu.memory_space<vmem>>, vector<1x128xf32>
    tpu.vector_store %arg3[%c22, %c0_45], %137 {strides = array<i32>} : memref<64x128xf32, #tpu.memory_space<vmem>>, vector<1x128xf32>,
    %c23_i32 = arith.constant 23 : i32
    %139 = arith.addi %0, %c23_i32 : i32
    %140 = arith.index_cast %139 : i32 to index
    %141 = memref.load %arg1[%140] : memref<64xi32, #tpu.memory_space<smem>>
    %142 = arith.index_cast %141 : i32 to index
    %c0_46 = arith.constant 0 : index
    %143 = vector.load %arg2[%142, %c0_46] : memref<64x128xf32, #tpu.memory_space<vmem>>, vector<1x128xf32>
    %c23 = arith.constant 23 : index
    %c0_47 = arith.constant 0 : index
    %144 = vector.load %arg3[%c23, %c0_47] : memref<64x128xf32, #tpu.memory_space<vmem>>, vector<1x128xf32>
    tpu.vector_store %arg3[%c23, %c0_47], %143 {strides = array<i32>} : memref<64x128xf32, #tpu.memory_space<vmem>>, vector<1x128xf32>,
    %c24_i32 = arith.constant 24 : i32
    %145 = arith.addi %0, %c24_i32 : i32
    %146 = arith.index_cast %145 : i32 to index
    %147 = memref.load %arg1[%146] : memref<64xi32, #tpu.memory_space<smem>>
    %148 = arith.index_cast %147 : i32 to index
    %c0_48 = arith.constant 0 : index
    %149 = vector.load %arg2[%148, %c0_48] : memref<64x128xf32, #tpu.memory_space<vmem>>, vector<1x128xf32>
    %c24 = arith.constant 24 : index
    %c0_49 = arith.constant 0 : index
    %150 = vector.load %arg3[%c24, %c0_49] : memref<64x128xf32, #tpu.memory_space<vmem>>, vector<1x128xf32>
    tpu.vector_store %arg3[%c24, %c0_49], %149 {strides = array<i32>} : memref<64x128xf32, #tpu.memory_space<vmem>>, vector<1x128xf32>,
    %c25_i32 = arith.constant 25 : i32
    %151 = arith.addi %0, %c25_i32 : i32
    %152 = arith.index_cast %151 : i32 to index
    %153 = memref.load %arg1[%152] : memref<64xi32, #tpu.memory_space<smem>>
    %154 = arith.index_cast %153 : i32 to index
    %c0_50 = arith.constant 0 : index
    %155 = vector.load %arg2[%154, %c0_50] : memref<64x128xf32, #tpu.memory_space<vmem>>, vector<1x128xf32>
    %c25 = arith.constant 25 : index
    %c0_51 = arith.constant 0 : index
    %156 = vector.load %arg3[%c25, %c0_51] : memref<64x128xf32, #tpu.memory_space<vmem>>, vector<1x128xf32>
    tpu.vector_store %arg3[%c25, %c0_51], %155 {strides = array<i32>} : memref<64x128xf32, #tpu.memory_space<vmem>>, vector<1x128xf32>,
    %c26_i32 = arith.constant 26 : i32
    %157 = arith.addi %0, %c26_i32 : i32
    %158 = arith.index_cast %157 : i32 to index
    %159 = memref.load %arg1[%158] : memref<64xi32, #tpu.memory_space<smem>>
    %160 = arith.index_cast %159 : i32 to index
    %c0_52 = arith.constant 0 : index
    %161 = vector.load %arg2[%160, %c0_52] : memref<64x128xf32, #tpu.memory_space<vmem>>, vector<1x128xf32>
    %c26 = arith.constant 26 : index
    %c0_53 = arith.constant 0 : index
    %162 = vector.load %arg3[%c26, %c0_53] : memref<64x128xf32, #tpu.memory_space<vmem>>, vector<1x128xf32>
    tpu.vector_store %arg3[%c26, %c0_53], %161 {strides = array<i32>} : memref<64x128xf32, #tpu.memory_space<vmem>>, vector<1x128xf32>,
    %c27_i32 = arith.constant 27 : i32
    %163 = arith.addi %0, %c27_i32 : i32
    %164 = arith.index_cast %163 : i32 to index
    %165 = memref.load %arg1[%164] : memref<64xi32, #tpu.memory_space<smem>>
    %166 = arith.index_cast %165 : i32 to index
    %c0_54 = arith.constant 0 : index
    %167 = vector.load %arg2[%166, %c0_54] : memref<64x128xf32, #tpu.memory_space<vmem>>, vector<1x128xf32>
    %c27 = arith.constant 27 : index
    %c0_55 = arith.constant 0 : index
    %168 = vector.load %arg3[%c27, %c0_55] : memref<64x128xf32, #tpu.memory_space<vmem>>, vector<1x128xf32>
    tpu.vector_store %arg3[%c27, %c0_55], %167 {strides = array<i32>} : memref<64x128xf32, #tpu.memory_space<vmem>>, vector<1x128xf32>,
    %c28_i32 = arith.constant 28 : i32
    %169 = arith.addi %0, %c28_i32 : i32
    %170 = arith.index_cast %169 : i32 to index
    %171 = memref.load %arg1[%170] : memref<64xi32, #tpu.memory_space<smem>>
    %172 = arith.index_cast %171 : i32 to index
    %c0_56 = arith.constant 0 : index
    %173 = vector.load %arg2[%172, %c0_56] : memref<64x128xf32, #tpu.memory_space<vmem>>, vector<1x128xf32>
    %c28 = arith.constant 28 : index
    %c0_57 = arith.constant 0 : index
    %174 = vector.load %arg3[%c28, %c0_57] : memref<64x128xf32, #tpu.memory_space<vmem>>, vector<1x128xf32>
    tpu.vector_store %arg3[%c28, %c0_57], %173 {strides = array<i32>} : memref<64x128xf32, #tpu.memory_space<vmem>>, vector<1x128xf32>,
    %c29_i32 = arith.constant 29 : i32
    %175 = arith.addi %0, %c29_i32 : i32
    %176 = arith.index_cast %175 : i32 to index
    %177 = memref.load %arg1[%176] : memref<64xi32, #tpu.memory_space<smem>>
    %178 = arith.index_cast %177 : i32 to index
    %c0_58 = arith.constant 0 : index
    %179 = vector.load %arg2[%178, %c0_58] : memref<64x128xf32, #tpu.memory_space<vmem>>, vector<1x128xf32>
    %c29 = arith.constant 29 : index
    %c0_59 = arith.constant 0 : index
    %180 = vector.load %arg3[%c29, %c0_59] : memref<64x128xf32, #tpu.memory_space<vmem>>, vector<1x128xf32>
    tpu.vector_store %arg3[%c29, %c0_59], %179 {strides = array<i32>} : memref<64x128xf32, #tpu.memory_space<vmem>>, vector<1x128xf32>,
    %c30_i32 = arith.constant 30 : i32
    %181 = arith.addi %0, %c30_i32 : i32
    %182 = arith.index_cast %181 : i32 to index
    %183 = memref.load %arg1[%182] : memref<64xi32, #tpu.memory_space<smem>>
    %184 = arith.index_cast %183 : i32 to index
    %c0_60 = arith.constant 0 : index
    %185 = vector.load %arg2[%184, %c0_60] : memref<64x128xf32, #tpu.memory_space<vmem>>, vector<1x128xf32>
    %c30 = arith.constant 30 : index
    %c0_61 = arith.constant 0 : index
    %186 = vector.load %arg3[%c30, %c0_61] : memref<64x128xf32, #tpu.memory_space<vmem>>, vector<1x128xf32>
    tpu.vector_store %arg3[%c30, %c0_61], %185 {strides = array<i32>} : memref<64x128xf32, #tpu.memory_space<vmem>>, vector<1x128xf32>,
    %c31_i32 = arith.constant 31 : i32
    %187 = arith.addi %0, %c31_i32 : i32
    %188 = arith.index_cast %187 : i32 to index
    %189 = memref.load %arg1[%188] : memref<64xi32, #tpu.memory_space<smem>>
    %190 = arith.index_cast %189 : i32 to index
    %c0_62 = arith.constant 0 : index
    %191 = vector.load %arg2[%190, %c0_62] : memref<64x128xf32, #tpu.memory_space<vmem>>, vector<1x128xf32>
    %c31 = arith.constant 31 : index
    %c0_63 = arith.constant 0 : index
    %192 = vector.load %arg3[%c31, %c0_63] : memref<64x128xf32, #tpu.memory_space<vmem>>, vector<1x128xf32>
    tpu.vector_store %arg3[%c31, %c0_63], %191 {strides = array<i32>} : memref<64x128xf32, #tpu.memory_space<vmem>>, vector<1x128xf32>,
    %c32_i32 = arith.constant 32 : i32
    %193 = arith.addi %0, %c32_i32 : i32
    %194 = arith.index_cast %193 : i32 to index
    %195 = memref.load %arg1[%194] : memref<64xi32, #tpu.memory_space<smem>>
    %196 = arith.index_cast %195 : i32 to index
    %c0_64 = arith.constant 0 : index
    %197 = vector.load %arg2[%196, %c0_64] : memref<64x128xf32, #tpu.memory_space<vmem>>, vector<1x128xf32>
    %c32 = arith.constant 32 : index
    %c0_65 = arith.constant 0 : index
    %198 = vector.load %arg3[%c32, %c0_65] : memref<64x128xf32, #tpu.memory_space<vmem>>, vector<1x128xf32>
    tpu.vector_store %arg3[%c32, %c0_65], %197 {strides = array<i32>} : memref<64x128xf32, #tpu.memory_space<vmem>>, vector<1x128xf32>,
    %c33_i32 = arith.constant 33 : i32
    %199 = arith.addi %0, %c33_i32 : i32
    %200 = arith.index_cast %199 : i32 to index
    %201 = memref.load %arg1[%200] : memref<64xi32, #tpu.memory_space<smem>>
    %202 = arith.index_cast %201 : i32 to index
    %c0_66 = arith.constant 0 : index
    %203 = vector.load %arg2[%202, %c0_66] : memref<64x128xf32, #tpu.memory_space<vmem>>, vector<1x128xf32>
    %c33 = arith.constant 33 : index
    %c0_67 = arith.constant 0 : index
    %204 = vector.load %arg3[%c33, %c0_67] : memref<64x128xf32, #tpu.memory_space<vmem>>, vector<1x128xf32>
    tpu.vector_store %arg3[%c33, %c0_67], %203 {strides = array<i32>} : memref<64x128xf32, #tpu.memory_space<vmem>>, vector<1x128xf32>,
    %c34_i32 = arith.constant 34 : i32
    %205 = arith.addi %0, %c34_i32 : i32
    %206 = arith.index_cast %205 : i32 to index
    %207 = memref.load %arg1[%206] : memref<64xi32, #tpu.memory_space<smem>>
    %208 = arith.index_cast %207 : i32 to index
    %c0_68 = arith.constant 0 : index
    %209 = vector.load %arg2[%208, %c0_68] : memref<64x128xf32, #tpu.memory_space<vmem>>, vector<1x128xf32>
    %c34 = arith.constant 34 : index
    %c0_69 = arith.constant 0 : index
    %210 = vector.load %arg3[%c34, %c0_69] : memref<64x128xf32, #tpu.memory_space<vmem>>, vector<1x128xf32>
    tpu.vector_store %arg3[%c34, %c0_69], %209 {strides = array<i32>} : memref<64x128xf32, #tpu.memory_space<vmem>>, vector<1x128xf32>,
    %c35_i32 = arith.constant 35 : i32
    %211 = arith.addi %0, %c35_i32 : i32
    %212 = arith.index_cast %211 : i32 to index
    %213 = memref.load %arg1[%212] : memref<64xi32, #tpu.memory_space<smem>>
    %214 = arith.index_cast %213 : i32 to index
    %c0_70 = arith.constant 0 : index
    %215 = vector.load %arg2[%214, %c0_70] : memref<64x128xf32, #tpu.memory_space<vmem>>, vector<1x128xf32>
    %c35 = arith.constant 35 : index
    %c0_71 = arith.constant 0 : index
    %216 = vector.load %arg3[%c35, %c0_71] : memref<64x128xf32, #tpu.memory_space<vmem>>, vector<1x128xf32>
    tpu.vector_store %arg3[%c35, %c0_71], %215 {strides = array<i32>} : memref<64x128xf32, #tpu.memory_space<vmem>>, vector<1x128xf32>,
    %c36_i32 = arith.constant 36 : i32
    %217 = arith.addi %0, %c36_i32 : i32
    %218 = arith.index_cast %217 : i32 to index
    %219 = memref.load %arg1[%218] : memref<64xi32, #tpu.memory_space<smem>>
    %220 = arith.index_cast %219 : i32 to index
    %c0_72 = arith.constant 0 : index
    %221 = vector.load %arg2[%220, %c0_72] : memref<64x128xf32, #tpu.memory_space<vmem>>, vector<1x128xf32>
    %c36 = arith.constant 36 : index
    %c0_73 = arith.constant 0 : index
    %222 = vector.load %arg3[%c36, %c0_73] : memref<64x128xf32, #tpu.memory_space<vmem>>, vector<1x128xf32>
    tpu.vector_store %arg3[%c36, %c0_73], %221 {strides = array<i32>} : memref<64x128xf32, #tpu.memory_space<vmem>>, vector<1x128xf32>,
    %c37_i32 = arith.constant 37 : i32
    %223 = arith.addi %0, %c37_i32 : i32
    %224 = arith.index_cast %223 : i32 to index
    %225 = memref.load %arg1[%224] : memref<64xi32, #tpu.memory_space<smem>>
    %226 = arith.index_cast %225 : i32 to index
    %c0_74 = arith.constant 0 : index
    %227 = vector.load %arg2[%226, %c0_74] : memref<64x128xf32, #tpu.memory_space<vmem>>, vector<1x128xf32>
    %c37 = arith.constant 37 : index
    %c0_75 = arith.constant 0 : index
    %228 = vector.load %arg3[%c37, %c0_75] : memref<64x128xf32, #tpu.memory_space<vmem>>, vector<1x128xf32>
    tpu.vector_store %arg3[%c37, %c0_75], %227 {strides = array<i32>} : memref<64x128xf32, #tpu.memory_space<vmem>>, vector<1x128xf32>,
    %c38_i32 = arith.constant 38 : i32
    %229 = arith.addi %0, %c38_i32 : i32
    %230 = arith.index_cast %229 : i32 to index
    %231 = memref.load %arg1[%230] : memref<64xi32, #tpu.memory_space<smem>>
    %232 = arith.index_cast %231 : i32 to index
    %c0_76 = arith.constant 0 : index
    %233 = vector.load %arg2[%232, %c0_76] : memref<64x128xf32, #tpu.memory_space<vmem>>, vector<1x128xf32>
    %c38 = arith.constant 38 : index
    %c0_77 = arith.constant 0 : index
    %234 = vector.load %arg3[%c38, %c0_77] : memref<64x128xf32, #tpu.memory_space<vmem>>, vector<1x128xf32>
    tpu.vector_store %arg3[%c38, %c0_77], %233 {strides = array<i32>} : memref<64x128xf32, #tpu.memory_space<vmem>>, vector<1x128xf32>,
    %c39_i32 = arith.constant 39 : i32
    %235 = arith.addi %0, %c39_i32 : i32
    %236 = arith.index_cast %235 : i32 to index
    %237 = memref.load %arg1[%236] : memref<64xi32, #tpu.memory_space<smem>>
    %238 = arith.index_cast %237 : i32 to index
    %c0_78 = arith.constant 0 : index
    %239 = vector.load %arg2[%238, %c0_78] : memref<64x128xf32, #tpu.memory_space<vmem>>, vector<1x128xf32>
    %c39 = arith.constant 39 : index
    %c0_79 = arith.constant 0 : index
    %240 = vector.load %arg3[%c39, %c0_79] : memref<64x128xf32, #tpu.memory_space<vmem>>, vector<1x128xf32>
    tpu.vector_store %arg3[%c39, %c0_79], %239 {strides = array<i32>} : memref<64x128xf32, #tpu.memory_space<vmem>>, vector<1x128xf32>,
    %c40_i32 = arith.constant 40 : i32
    %241 = arith.addi %0, %c40_i32 : i32
    %242 = arith.index_cast %241 : i32 to index
    %243 = memref.load %arg1[%242] : memref<64xi32, #tpu.memory_space<smem>>
    %244 = arith.index_cast %243 : i32 to index
    %c0_80 = arith.constant 0 : index
    %245 = vector.load %arg2[%244, %c0_80] : memref<64x128xf32, #tpu.memory_space<vmem>>, vector<1x128xf32>
    %c40 = arith.constant 40 : index
    %c0_81 = arith.constant 0 : index
    %246 = vector.load %arg3[%c40, %c0_81] : memref<64x128xf32, #tpu.memory_space<vmem>>, vector<1x128xf32>
    tpu.vector_store %arg3[%c40, %c0_81], %245 {strides = array<i32>} : memref<64x128xf32, #tpu.memory_space<vmem>>, vector<1x128xf32>,
    %c41_i32 = arith.constant 41 : i32
    %247 = arith.addi %0, %c41_i32 : i32
    %248 = arith.index_cast %247 : i32 to index
    %249 = memref.load %arg1[%248] : memref<64xi32, #tpu.memory_space<smem>>
    %250 = arith.index_cast %249 : i32 to index
    %c0_82 = arith.constant 0 : index
    %251 = vector.load %arg2[%250, %c0_82] : memref<64x128xf32, #tpu.memory_space<vmem>>, vector<1x128xf32>
    %c41 = arith.constant 41 : index
    %c0_83 = arith.constant 0 : index
    %252 = vector.load %arg3[%c41, %c0_83] : memref<64x128xf32, #tpu.memory_space<vmem>>, vector<1x128xf32>
    tpu.vector_store %arg3[%c41, %c0_83], %251 {strides = array<i32>} : memref<64x128xf32, #tpu.memory_space<vmem>>, vector<1x128xf32>,
    %c42_i32 = arith.constant 42 : i32
    %253 = arith.addi %0, %c42_i32 : i32
    %254 = arith.index_cast %253 : i32 to index
    %255 = memref.load %arg1[%254] : memref<64xi32, #tpu.memory_space<smem>>
    %256 = arith.index_cast %255 : i32 to index
    %c0_84 = arith.constant 0 : index
    %257 = vector.load %arg2[%256, %c0_84] : memref<64x128xf32, #tpu.memory_space<vmem>>, vector<1x128xf32>
    %c42 = arith.constant 42 : index
    %c0_85 = arith.constant 0 : index
    %258 = vector.load %arg3[%c42, %c0_85] : memref<64x128xf32, #tpu.memory_space<vmem>>, vector<1x128xf32>
    tpu.vector_store %arg3[%c42, %c0_85], %257 {strides = array<i32>} : memref<64x128xf32, #tpu.memory_space<vmem>>, vector<1x128xf32>,
    %c43_i32 = arith.constant 43 : i32
    %259 = arith.addi %0, %c43_i32 : i32
    %260 = arith.index_cast %259 : i32 to index
    %261 = memref.load %arg1[%260] : memref<64xi32, #tpu.memory_space<smem>>
    %262 = arith.index_cast %261 : i32 to index
    %c0_86 = arith.constant 0 : index
    %263 = vector.load %arg2[%262, %c0_86] : memref<64x128xf32, #tpu.memory_space<vmem>>, vector<1x128xf32>
    %c43 = arith.constant 43 : index
    %c0_87 = arith.constant 0 : index
    %264 = vector.load %arg3[%c43, %c0_87] : memref<64x128xf32, #tpu.memory_space<vmem>>, vector<1x128xf32>
    tpu.vector_store %arg3[%c43, %c0_87], %263 {strides = array<i32>} : memref<64x128xf32, #tpu.memory_space<vmem>>, vector<1x128xf32>,
    %c44_i32 = arith.constant 44 : i32
    %265 = arith.addi %0, %c44_i32 : i32
    %266 = arith.index_cast %265 : i32 to index
    %267 = memref.load %arg1[%266] : memref<64xi32, #tpu.memory_space<smem>>
    %268 = arith.index_cast %267 : i32 to index
    %c0_88 = arith.constant 0 : index
    %269 = vector.load %arg2[%268, %c0_88] : memref<64x128xf32, #tpu.memory_space<vmem>>, vector<1x128xf32>
    %c44 = arith.constant 44 : index
    %c0_89 = arith.constant 0 : index
    %270 = vector.load %arg3[%c44, %c0_89] : memref<64x128xf32, #tpu.memory_space<vmem>>, vector<1x128xf32>
    tpu.vector_store %arg3[%c44, %c0_89], %269 {strides = array<i32>} : memref<64x128xf32, #tpu.memory_space<vmem>>, vector<1x128xf32>,
    %c45_i32 = arith.constant 45 : i32
    %271 = arith.addi %0, %c45_i32 : i32
    %272 = arith.index_cast %271 : i32 to index
    %273 = memref.load %arg1[%272] : memref<64xi32, #tpu.memory_space<smem>>
    %274 = arith.index_cast %273 : i32 to index
    %c0_90 = arith.constant 0 : index
    %275 = vector.load %arg2[%274, %c0_90] : memref<64x128xf32, #tpu.memory_space<vmem>>, vector<1x128xf32>
    %c45 = arith.constant 45 : index
    %c0_91 = arith.constant 0 : index
    %276 = vector.load %arg3[%c45, %c0_91] : memref<64x128xf32, #tpu.memory_space<vmem>>, vector<1x128xf32>
    tpu.vector_store %arg3[%c45, %c0_91], %275 {strides = array<i32>} : memref<64x128xf32, #tpu.memory_space<vmem>>, vector<1x128xf32>,
    %c46_i32 = arith.constant 46 : i32
    %277 = arith.addi %0, %c46_i32 : i32
    %278 = arith.index_cast %277 : i32 to index
    %279 = memref.load %arg1[%278] : memref<64xi32, #tpu.memory_space<smem>>
    %280 = arith.index_cast %279 : i32 to index
    %c0_92 = arith.constant 0 : index
    %281 = vector.load %arg2[%280, %c0_92] : memref<64x128xf32, #tpu.memory_space<vmem>>, vector<1x128xf32>
    %c46 = arith.constant 46 : index
    %c0_93 = arith.constant 0 : index
    %282 = vector.load %arg3[%c46, %c0_93] : memref<64x128xf32, #tpu.memory_space<vmem>>, vector<1x128xf32>
    tpu.vector_store %arg3[%c46, %c0_93], %281 {strides = array<i32>} : memref<64x128xf32, #tpu.memory_space<vmem>>, vector<1x128xf32>,
    %c47_i32 = arith.constant 47 : i32
    %283 = arith.addi %0, %c47_i32 : i32
    %284 = arith.index_cast %283 : i32 to index
    %285 = memref.load %arg1[%284] : memref<64xi32, #tpu.memory_space<smem>>
    %286 = arith.index_cast %285 : i32 to index
    %c0_94 = arith.constant 0 : index
    %287 = vector.load %arg2[%286, %c0_94] : memref<64x128xf32, #tpu.memory_space<vmem>>, vector<1x128xf32>
    %c47 = arith.constant 47 : index
    %c0_95 = arith.constant 0 : index
    %288 = vector.load %arg3[%c47, %c0_95] : memref<64x128xf32, #tpu.memory_space<vmem>>, vector<1x128xf32>
    tpu.vector_store %arg3[%c47, %c0_95], %287 {strides = array<i32>} : memref<64x128xf32, #tpu.memory_space<vmem>>, vector<1x128xf32>,
    %c48_i32 = arith.constant 48 : i32
    %289 = arith.addi %0, %c48_i32 : i32
    %290 = arith.index_cast %289 : i32 to index
    %291 = memref.load %arg1[%290] : memref<64xi32, #tpu.memory_space<smem>>
    %292 = arith.index_cast %291 : i32 to index
    %c0_96 = arith.constant 0 : index
    %293 = vector.load %arg2[%292, %c0_96] : memref<64x128xf32, #tpu.memory_space<vmem>>, vector<1x128xf32>
    %c48 = arith.constant 48 : index
    %c0_97 = arith.constant 0 : index
    %294 = vector.load %arg3[%c48, %c0_97] : memref<64x128xf32, #tpu.memory_space<vmem>>, vector<1x128xf32>
    tpu.vector_store %arg3[%c48, %c0_97], %293 {strides = array<i32>} : memref<64x128xf32, #tpu.memory_space<vmem>>, vector<1x128xf32>,
    %c49_i32 = arith.constant 49 : i32
    %295 = arith.addi %0, %c49_i32 : i32
    %296 = arith.index_cast %295 : i32 to index
    %297 = memref.load %arg1[%296] : memref<64xi32, #tpu.memory_space<smem>>
    %298 = arith.index_cast %297 : i32 to index
    %c0_98 = arith.constant 0 : index
    %299 = vector.load %arg2[%298, %c0_98] : memref<64x128xf32, #tpu.memory_space<vmem>>, vector<1x128xf32>
    %c49 = arith.constant 49 : index
    %c0_99 = arith.constant 0 : index
    %300 = vector.load %arg3[%c49, %c0_99] : memref<64x128xf32, #tpu.memory_space<vmem>>, vector<1x128xf32>
    tpu.vector_store %arg3[%c49, %c0_99], %299 {strides = array<i32>} : memref<64x128xf32, #tpu.memory_space<vmem>>, vector<1x128xf32>,
    %c50_i32 = arith.constant 50 : i32
    %301 = arith.addi %0, %c50_i32 : i32
    %302 = arith.index_cast %301 : i32 to index
    %303 = memref.load %arg1[%302] : memref<64xi32, #tpu.memory_space<smem>>
    %304 = arith.index_cast %303 : i32 to index
    %c0_100 = arith.constant 0 : index
    %305 = vector.load %arg2[%304, %c0_100] : memref<64x128xf32, #tpu.memory_space<vmem>>, vector<1x128xf32>
    %c50 = arith.constant 50 : index
    %c0_101 = arith.constant 0 : index
    %306 = vector.load %arg3[%c50, %c0_101] : memref<64x128xf32, #tpu.memory_space<vmem>>, vector<1x128xf32>
    tpu.vector_store %arg3[%c50, %c0_101], %305 {strides = array<i32>} : memref<64x128xf32, #tpu.memory_space<vmem>>, vector<1x128xf32>,
    %c51_i32 = arith.constant 51 : i32
    %307 = arith.addi %0, %c51_i32 : i32
    %308 = arith.index_cast %307 : i32 to index
    %309 = memref.load %arg1[%308] : memref<64xi32, #tpu.memory_space<smem>>
    %310 = arith.index_cast %309 : i32 to index
    %c0_102 = arith.constant 0 : index
    %311 = vector.load %arg2[%310, %c0_102] : memref<64x128xf32, #tpu.memory_space<vmem>>, vector<1x128xf32>
    %c51 = arith.constant 51 : index
    %c0_103 = arith.constant 0 : index
    %312 = vector.load %arg3[%c51, %c0_103] : memref<64x128xf32, #tpu.memory_space<vmem>>, vector<1x128xf32>
    tpu.vector_store %arg3[%c51, %c0_103], %311 {strides = array<i32>} : memref<64x128xf32, #tpu.memory_space<vmem>>, vector<1x128xf32>,
    %c52_i32 = arith.constant 52 : i32
    %313 = arith.addi %0, %c52_i32 : i32
    %314 = arith.index_cast %313 : i32 to index
    %315 = memref.load %arg1[%314] : memref<64xi32, #tpu.memory_space<smem>>
    %316 = arith.index_cast %315 : i32 to index
    %c0_104 = arith.constant 0 : index
    %317 = vector.load %arg2[%316, %c0_104] : memref<64x128xf32, #tpu.memory_space<vmem>>, vector<1x128xf32>
    %c52 = arith.constant 52 : index
    %c0_105 = arith.constant 0 : index
    %318 = vector.load %arg3[%c52, %c0_105] : memref<64x128xf32, #tpu.memory_space<vmem>>, vector<1x128xf32>
    tpu.vector_store %arg3[%c52, %c0_105], %317 {strides = array<i32>} : memref<64x128xf32, #tpu.memory_space<vmem>>, vector<1x128xf32>,
    %c53_i32 = arith.constant 53 : i32
    %319 = arith.addi %0, %c53_i32 : i32
    %320 = arith.index_cast %319 : i32 to index
    %321 = memref.load %arg1[%320] : memref<64xi32, #tpu.memory_space<smem>>
    %322 = arith.index_cast %321 : i32 to index
    %c0_106 = arith.constant 0 : index
    %323 = vector.load %arg2[%322, %c0_106] : memref<64x128xf32, #tpu.memory_space<vmem>>, vector<1x128xf32>
    %c53 = arith.constant 53 : index
    %c0_107 = arith.constant 0 : index
    %324 = vector.load %arg3[%c53, %c0_107] : memref<64x128xf32, #tpu.memory_space<vmem>>, vector<1x128xf32>
    tpu.vector_store %arg3[%c53, %c0_107], %323 {strides = array<i32>} : memref<64x128xf32, #tpu.memory_space<vmem>>, vector<1x128xf32>,
    %c54_i32 = arith.constant 54 : i32
    %325 = arith.addi %0, %c54_i32 : i32
    %326 = arith.index_cast %325 : i32 to index
    %327 = memref.load %arg1[%326] : memref<64xi32, #tpu.memory_space<smem>>
    %328 = arith.index_cast %327 : i32 to index
    %c0_108 = arith.constant 0 : index
    %329 = vector.load %arg2[%328, %c0_108] : memref<64x128xf32, #tpu.memory_space<vmem>>, vector<1x128xf32>
    %c54 = arith.constant 54 : index
    %c0_109 = arith.constant 0 : index
    %330 = vector.load %arg3[%c54, %c0_109] : memref<64x128xf32, #tpu.memory_space<vmem>>, vector<1x128xf32>
    tpu.vector_store %arg3[%c54, %c0_109], %329 {strides = array<i32>} : memref<64x128xf32, #tpu.memory_space<vmem>>, vector<1x128xf32>,
    %c55_i32 = arith.constant 55 : i32
    %331 = arith.addi %0, %c55_i32 : i32
    %332 = arith.index_cast %331 : i32 to index
    %333 = memref.load %arg1[%332] : memref<64xi32, #tpu.memory_space<smem>>
    %334 = arith.index_cast %333 : i32 to index
    %c0_110 = arith.constant 0 : index
    %335 = vector.load %arg2[%334, %c0_110] : memref<64x128xf32, #tpu.memory_space<vmem>>, vector<1x128xf32>
    %c55 = arith.constant 55 : index
    %c0_111 = arith.constant 0 : index
    %336 = vector.load %arg3[%c55, %c0_111] : memref<64x128xf32, #tpu.memory_space<vmem>>, vector<1x128xf32>
    tpu.vector_store %arg3[%c55, %c0_111], %335 {strides = array<i32>} : memref<64x128xf32, #tpu.memory_space<vmem>>, vector<1x128xf32>,
    %c56_i32 = arith.constant 56 : i32
    %337 = arith.addi %0, %c56_i32 : i32
    %338 = arith.index_cast %337 : i32 to index
    %339 = memref.load %arg1[%338] : memref<64xi32, #tpu.memory_space<smem>>
    %340 = arith.index_cast %339 : i32 to index
    %c0_112 = arith.constant 0 : index
    %341 = vector.load %arg2[%340, %c0_112] : memref<64x128xf32, #tpu.memory_space<vmem>>, vector<1x128xf32>
    %c56 = arith.constant 56 : index
    %c0_113 = arith.constant 0 : index
    %342 = vector.load %arg3[%c56, %c0_113] : memref<64x128xf32, #tpu.memory_space<vmem>>, vector<1x128xf32>
    tpu.vector_store %arg3[%c56, %c0_113], %341 {strides = array<i32>} : memref<64x128xf32, #tpu.memory_space<vmem>>, vector<1x128xf32>,
    %c57_i32 = arith.constant 57 : i32
    %343 = arith.addi %0, %c57_i32 : i32
    %344 = arith.index_cast %343 : i32 to index
    %345 = memref.load %arg1[%344] : memref<64xi32, #tpu.memory_space<smem>>
    %346 = arith.index_cast %345 : i32 to index
    %c0_114 = arith.constant 0 : index
    %347 = vector.load %arg2[%346, %c0_114] : memref<64x128xf32, #tpu.memory_space<vmem>>, vector<1x128xf32>
    %c57 = arith.constant 57 : index
    %c0_115 = arith.constant 0 : index
    %348 = vector.load %arg3[%c57, %c0_115] : memref<64x128xf32, #tpu.memory_space<vmem>>, vector<1x128xf32>
    tpu.vector_store %arg3[%c57, %c0_115], %347 {strides = array<i32>} : memref<64x128xf32, #tpu.memory_space<vmem>>, vector<1x128xf32>,
    %c58_i32 = arith.constant 58 : i32
    %349 = arith.addi %0, %c58_i32 : i32
    %350 = arith.index_cast %349 : i32 to index
    %351 = memref.load %arg1[%350] : memref<64xi32, #tpu.memory_space<smem>>
    %352 = arith.index_cast %351 : i32 to index
    %c0_116 = arith.constant 0 : index
    %353 = vector.load %arg2[%352, %c0_116] : memref<64x128xf32, #tpu.memory_space<vmem>>, vector<1x128xf32>
    %c58 = arith.constant 58 : index
    %c0_117 = arith.constant 0 : index
    %354 = vector.load %arg3[%c58, %c0_117] : memref<64x128xf32, #tpu.memory_space<vmem>>, vector<1x128xf32>
    tpu.vector_store %arg3[%c58, %c0_117], %353 {strides = array<i32>} : memref<64x128xf32, #tpu.memory_space<vmem>>, vector<1x128xf32>,
    %c59_i32 = arith.constant 59 : i32
    %355 = arith.addi %0, %c59_i32 : i32
    %356 = arith.index_cast %355 : i32 to index
    %357 = memref.load %arg1[%356] : memref<64xi32, #tpu.memory_space<smem>>
    %358 = arith.index_cast %357 : i32 to index
    %c0_118 = arith.constant 0 : index
    %359 = vector.load %arg2[%358, %c0_118] : memref<64x128xf32, #tpu.memory_space<vmem>>, vector<1x128xf32>
    %c59 = arith.constant 59 : index
    %c0_119 = arith.constant 0 : index
    %360 = vector.load %arg3[%c59, %c0_119] : memref<64x128xf32, #tpu.memory_space<vmem>>, vector<1x128xf32>
    tpu.vector_store %arg3[%c59, %c0_119], %359 {strides = array<i32>} : memref<64x128xf32, #tpu.memory_space<vmem>>, vector<1x128xf32>,
    %c60_i32 = arith.constant 60 : i32
    %361 = arith.addi %0, %c60_i32 : i32
    %362 = arith.index_cast %361 : i32 to index
    %363 = memref.load %arg1[%362] : memref<64xi32, #tpu.memory_space<smem>>
    %364 = arith.index_cast %363 : i32 to index
    %c0_120 = arith.constant 0 : index
    %365 = vector.load %arg2[%364, %c0_120] : memref<64x128xf32, #tpu.memory_space<vmem>>, vector<1x128xf32>
    %c60 = arith.constant 60 : index
    %c0_121 = arith.constant 0 : index
    %366 = vector.load %arg3[%c60, %c0_121] : memref<64x128xf32, #tpu.memory_space<vmem>>, vector<1x128xf32>
    tpu.vector_store %arg3[%c60, %c0_121], %365 {strides = array<i32>} : memref<64x128xf32, #tpu.memory_space<vmem>>, vector<1x128xf32>,
    %c61_i32 = arith.constant 61 : i32
    %367 = arith.addi %0, %c61_i32 : i32
    %368 = arith.index_cast %367 : i32 to index
    %369 = memref.load %arg1[%368] : memref<64xi32, #tpu.memory_space<smem>>
    %370 = arith.index_cast %369 : i32 to index
    %c0_122 = arith.constant 0 : index
    %371 = vector.load %arg2[%370, %c0_122] : memref<64x128xf32, #tpu.memory_space<vmem>>, vector<1x128xf32>
    %c61 = arith.constant 61 : index
    %c0_123 = arith.constant 0 : index
    %372 = vector.load %arg3[%c61, %c0_123] : memref<64x128xf32, #tpu.memory_space<vmem>>, vector<1x128xf32>
    tpu.vector_store %arg3[%c61, %c0_123], %371 {strides = array<i32>} : memref<64x128xf32, #tpu.memory_space<vmem>>, vector<1x128xf32>,
    %c62_i32 = arith.constant 62 : i32
    %373 = arith.addi %0, %c62_i32 : i32
    %374 = arith.index_cast %373 : i32 to index
    %375 = memref.load %arg1[%374] : memref<64xi32, #tpu.memory_space<smem>>
    %376 = arith.index_cast %375 : i32 to index
    %c0_124 = arith.constant 0 : index
    %377 = vector.load %arg2[%376, %c0_124] : memref<64x128xf32, #tpu.memory_space<vmem>>, vector<1x128xf32>
    %c62 = arith.constant 62 : index
    %c0_125 = arith.constant 0 : index
    %378 = vector.load %arg3[%c62, %c0_125] : memref<64x128xf32, #tpu.memory_space<vmem>>, vector<1x128xf32>
    tpu.vector_store %arg3[%c62, %c0_125], %377 {strides = array<i32>} : memref<64x128xf32, #tpu.memory_space<vmem>>, vector<1x128xf32>,
    %c63_i32 = arith.constant 63 : i32
    %379 = arith.addi %0, %c63_i32 : i32
    %380 = arith.index_cast %379 : i32 to index
    %381 = memref.load %arg1[%380] : memref<64xi32, #tpu.memory_space<smem>>
    %382 = arith.index_cast %381 : i32 to index
    %c0_126 = arith.constant 0 : index
    %383 = vector.load %arg2[%382, %c0_126] : memref<64x128xf32, #tpu.memory_space<vmem>>, vector<1x128xf32>
    %c63 = arith.constant 63 : index
    %c0_127 = arith.constant 0 : index
    %384 = vector.load %arg3[%c63, %c0_127] : memref<64x128xf32, #tpu.memory_space<vmem>>, vector<1x128xf32>
    tpu.vector_store %arg3[%c63, %c0_127], %383 {strides = array<i32>} : memref<64x128xf32, #tpu.memory_space<vmem>>, vector<1x128xf32>,
    return
  }
  func.func @transform_0(%arg0: i32, %arg1: memref<64xi32, #tpu.memory_space<smem>>) -> (i32, i32) {
    %c0_i32 = arith.constant 0 : i32
    %c0_i32_0 = arith.constant 0 : i32
    %c0_i32_1 = arith.constant 0 : i32
    return %c0_i32, %c0_i32_0 : i32, i32
  }
  func.func @transform_1(%arg0: i32, %arg1: memref<64xi32, #tpu.memory_space<smem>>) -> (i32, i32) {
    %c0_i32 = arith.constant 0 : i32
    %c0_i32_0 = arith.constant 0 : i32
    return %arg0, %c0_i32 : i32, i32
  }
}

</mosaic_0001>

<llo_original>
// kernel: _selector_forward_impl.1
$region0: #{_selector_forward_impl.1}
  #allocation0 [shape = 'u32[]', space=smem, size = 0x4, offset = 0x4, fixed_abs, tag = 'smem constant byte address 0x4 - core index']
  #allocation1 [shape = 'u32[144,128]{1,0:T(1,128)}', space=vmem, size = 0x12000, scoped, tag = 'internal scratch']
  #allocation2 [shape = 's32[1]{0}', space=sflag, size = 0x4, scoped, tag = 'scoped memory for _selector_forward_impl.1']
  #allocation3 [shape = 'u8[512]{0}', space=smem, size = 0x200, scoped, tag = 'prefetched SMEM operand 0']
  %s0 = inlined_call_operand.vmem [shape: s32[64], index: 0, kind: input, shape index: {}]
  %s1 = inlined_call_operand.vmem [shape: f32[64,128], index: 1, kind: input, shape index: {}]
  %s2 = inlined_call_operand.vmem [shape: f32[64,128], index: 2, kind: output, shape index: {}]
  %s3 = sld [smem:[#allocation0]]
  $region14: #{_selector_forward_impl.1} parent=0
    _
  %s5 = ssub.s32 1, %s3
  %s6 = scalar_select 0, %s5, %s3
  %s7 = sshll.u32 %s0, 4
  %s8 = int_to_ptr.vmem [resolvable:$true] %s7
  %10 = dma.vmem_to_smem %s8, 16, [#allocation3], [#allocation2]
  %11 = dma.done [#allocation2], 16
  %12 = sfence
  // Predicated region
  $region2: #{_selector_forward_impl.1} parent=0 // pred_check
    _
  $region3: #{_selector_forward_impl.1} parent=0 // pred_check_branch
    %14 = sbr.rel (0) target = $region5
  $region4: #{_selector_forward_impl.1} parent=0 // pred_region
    _
  $region5: #{_selector_forward_impl.1} parent=0 // pred_fallthru
    _
  %s15 = smul.u32 0, 64
  %s16 = sld [smem:[#allocation3 + %s15]]
  %s17 = scalar_lea.vmem %s1, %s16
  %v18 = vld [vmem:[%s17] sm:$0x1]
  %19 = vst [vmem:[%s2] sm:$0x1] %v18
  %s20 = sadd.s32 %s15, 1
  %s21 = sld [smem:[#allocation3 + %s20]]
  %s22 = scalar_lea.vmem %s1, %s21
  %v23 = vld [vmem:[%s22] sm:$0x1]
  %24 = vst [vmem:[%s2 + $0x1] sm:$0x1] %v23
  %s25 = sadd.s32 %s15, 2
  %s26 = sld [smem:[#allocation3 + %s25]]
  %s27 = scalar_lea.vmem %s1, %s26
  %v28 = vld [vmem:[%s27] sm:$0x1]
  %29 = vst [vmem:[%s2 + $0x2] sm:$0x1] %v28
  %s30 = sadd.s32 %s15, 3
  %s31 = sld [smem:[#allocation3 + %s30]]
  %s32 = scalar_lea.vmem %s1, %s31
  %v33 = vld [vmem:[%s32] sm:$0x1]
  %34 = vst [vmem:[%s2 + $0x3] sm:$0x1] %v33
  %s35 = sadd.s32 %s15, 4
  %s36 = sld [smem:[#allocation3 + %s35]]
  %s37 = scalar_lea.vmem %s1, %s36
  %v38 = vld [vmem:[%s37] sm:$0x1]
  %39 = vst [vmem:[%s2 + $0x4] sm:$0x1] %v38
  %s40 = sadd.s32 %s15, 5
  %s41 = sld [smem:[#allocation3 + %s40]]
  %s42 = scalar_lea.vmem %s1, %s41
  %v43 = vld [vmem:[%s42] sm:$0x1]
  %44 = vst [vmem:[%s2 + $0x5] sm:$0x1] %v43
  %s45 = sadd.s32 %s15, 6
  %s46 = sld [smem:[#allocation3 + %s45]]
  %s47 = scalar_lea.vmem %s1, %s46
  %v48 = vld [vmem:[%s47] sm:$0x1]
  %49 = vst [vmem:[%s2 + $0x6] sm:$0x1] %v48
  %s50 = sadd.s32 %s15, 7
  %s51 = sld [smem:[#allocation3 + %s50]]
  %s52 = scalar_lea.vmem %s1, %s51
  %v53 = vld [vmem:[%s52] sm:$0x1]
  %54 = vst [vmem:[%s2 + $0x7] sm:$0x1] %v53
  %s55 = sadd.s32 %s15, 8
  %s56 = sld [smem:[#allocation3 + %s55]]
  %s57 = scalar_lea.vmem %s1, %s56
  %v58 = vld [vmem:[%s57] sm:$0x1]
  %59 = vst [vmem:[%s2 + $0x8] sm:$0x1] %v58
  %s60 = sadd.s32 %s15, 9
  %s61 = sld [smem:[#allocation3 + %s60]]
  %s62 = scalar_lea.vmem %s1, %s61
  %v63 = vld [vmem:[%s62] sm:$0x1]
  %64 = vst [vmem:[%s2 + $0x9] sm:$0x1] %v63
  %s65 = sadd.s32 %s15, 10
  %s66 = sld [smem:[#allocation3 + %s65]]
  %s67 = scalar_lea.vmem %s1, %s66
  %v68 = vld [vmem:[%s67] sm:$0x1]
  %69 = vst [vmem:[%s2 + $0xa] sm:$0x1] %v68
  %s70 = sadd.s32 %s15, 11
  %s71 = sld [smem:[#allocation3 + %s70]]
  %s72 = scalar_lea.vmem %s1, %s71
  %v73 = vld [vmem:[%s72] sm:$0x1]
  %74 = vst [vmem:[%s2 + $0xb] sm:$0x1] %v73
  %s75 = sadd.s32 %s15, 12
  %s76 = sld [smem:[#allocation3 + %s75]]
  %s77 = scalar_lea.vmem %s1, %s76
  %v78 = vld [vmem:[%s77] sm:$0x1]
  %79 = vst [vmem:[%s2 + $0xc] sm:$0x1] %v78
  %s80 = sadd.s32 %s15, 13
  %s81 = sld [smem:[#allocation3 + %s80]]
  %s82 = scalar_lea.vmem %s1, %s81
  %v83 = vld [vmem:[%s82] sm:$0x1]
  %84 = vst [vmem:[%s2 + $0xd] sm:$0x1] %v83
  %s85 = sadd.s32 %s15, 14
  %s86 = sld [smem:[#allocation3 + %s85]]
  %s87 = scalar_lea.vmem %s1, %s86
  %v88 = vld [vmem:[%s87] sm:$0x1]
  %89 = vst [vmem:[%s2 + $0xe] sm:$0x1] %v88
  %s90 = sadd.s32 %s15, 15
  %s91 = sld [smem:[#allocation3 + %s90]]
  %s92 = scalar_lea.vmem %s1, %s91
  %v93 = vld [vmem:[%s92] sm:$0x1]
  %94 = vst [vmem:[%s2 + $0xf] sm:$0x1] %v93
  %s95 = sadd.s32 %s15, 16
  %s96 = sld [smem:[#allocation3 + %s95]]
  %s97 = scalar_lea.vmem %s1, %s96
  %v98 = vld [vmem:[%s97] sm:$0x1]
  %99 = vst [vmem:[%s2 + $0x10] sm:$0x1] %v98
  %s100 = sadd.s32 %s15, 17
  %s101 = sld [smem:[#allocation3 + %s100]]
  %s102 = scalar_lea.vmem %s1, %s101
  %v103 = vld [vmem:[%s102] sm:$0x1]
  %104 = vst [vmem:[%s2 + $0x11] sm:$0x1] %v103
  %s105 = sadd.s32 %s15, 18
  %s106 = sld [smem:[#allocation3 + %s105]]
  %s107 = scalar_lea.vmem %s1, %s106
  %v108 = vld [vmem:[%s107] sm:$0x1]
  %109 = vst [vmem:[%s2 + $0x12] sm:$0x1] %v108
  %s110 = sadd.s32 %s15, 19
  %s111 = sld [smem:[#allocation3 + %s110]]
  %s112 = scalar_lea.vmem %s1, %s111
  %v113 = vld [vmem:[%s112] sm:$0x1]
  %114 = vst [vmem:[%s2 + $0x13] sm:$0x1] %v113
  %s115 = sadd.s32 %s15, 20
  %s116 = sld [smem:[#allocation3 + %s115]]
  %s117 = scalar_lea.vmem %s1, %s116
  %v118 = vld [vmem:[%s117] sm:$0x1]
  %119 = vst [vmem:[%s2 + $0x14] sm:$0x1] %v118
  %s120 = sadd.s32 %s15, 21
  %s121 = sld [smem:[#allocation3 + %s120]]
  %s122 = scalar_lea.vmem %s1, %s121
  %v123 = vld [vmem:[%s122] sm:$0x1]
  %124 = vst [vmem:[%s2 + $0x15] sm:$0x1] %v123
  %s125 = sadd.s32 %s15, 22
  %s126 = sld [smem:[#allocation3 + %s125]]
  %s127 = scalar_lea.vmem %s1, %s126
  %v128 = vld [vmem:[%s127] sm:$0x1]
  %129 = vst [vmem:[%s2 + $0x16] sm:$0x1] %v128
  %s130 = sadd.s32 %s15, 23
  %s131 = sld [smem:[#allocation3 + %s130]]
  %s132 = scalar_lea.vmem %s1, %s131
  %v133 = vld [vmem:[%s132] sm:$0x1]
  %134 = vst [vmem:[%s2 + $0x17] sm:$0x1] %v133
  %s135 = sadd.s32 %s15, 24
  %s136 = sld [smem:[#allocation3 + %s135]]
  %s137 = scalar_lea.vmem %s1, %s136
  %v138 = vld [vmem:[%s137] sm:$0x1]
  %139 = vst [vmem:[%s2 + $0x18] sm:$0x1] %v138
  %s140 = sadd.s32 %s15, 25
  %s141 = sld [smem:[#allocation3 + %s140]]
  %s142 = scalar_lea.vmem %s1, %s141
  %v143 = vld [vmem:[%s142] sm:$0x1]
  %144 = vst [vmem:[%s2 + $0x19] sm:$0x1] %v143
  %s145 = sadd.s32 %s15, 26
  %s146 = sld [smem:[#allocation3 + %s145]]
  %s147 = scalar_lea.vmem %s1, %s146
  %v148 = vld [vmem:[%s147] sm:$0x1]
  %149 = vst [vmem:[%s2 + $0x1a] sm:$0x1] %v148
  %s150 = sadd.s32 %s15, 27
  %s151 = sld [smem:[#allocation3 + %s150]]
  %s152 = scalar_lea.vmem %s1, %s151
  %v153 = vld [vmem:[%s152] sm:$0x1]
  %154 = vst [vmem:[%s2 + $0x1b] sm:$0x1] %v153
  %s155 = sadd.s32 %s15, 28
  %s156 = sld [smem:[#allocation3 + %s155]]
  %s157 = scalar_lea.vmem %s1, %s156
  %v158 = vld [vmem:[%s157] sm:$0x1]
  %159 = vst [vmem:[%s2 + $0x1c] sm:$0x1] %v158
  %s160 = sadd.s32 %s15, 29
  %s161 = sld [smem:[#allocation3 + %s160]]
  %s162 = scalar_lea.vmem %s1, %s161
  %v163 = vld [vmem:[%s162] sm:$0x1]
  %164 = vst [vmem:[%s2 + $0x1d] sm:$0x1] %v163
  %s165 = sadd.s32 %s15, 30
  %s166 = sld [smem:[#allocation3 + %s165]]
  %s167 = scalar_lea.vmem %s1, %s166
  %v168 = vld [vmem:[%s167] sm:$0x1]
  %169 = vst [vmem:[%s2 + $0x1e] sm:$0x1] %v168
  %s170 = sadd.s32 %s15, 31
  %s171 = sld [smem:[#allocation3 + %s170]]
  %s172 = scalar_lea.vmem %s1, %s171
  %v173 = vld [vmem:[%s172] sm:$0x1]
  %174 = vst [vmem:[%s2 + $0x1f] sm:$0x1] %v173
  %s175 = sadd.s32 %s15, 32
  %s176 = sld [smem:[#allocation3 + %s175]]
  %s177 = scalar_lea.vmem %s1, %s176
  %v178 = vld [vmem:[%s177] sm:$0x1]
  %179 = vst [vmem:[%s2 + $0x20] sm:$0x1] %v178
  %s180 = sadd.s32 %s15, 33
  %s181 = sld [smem:[#allocation3 + %s180]]
  %s182 = scalar_lea.vmem %s1, %s181
  %v183 = vld [vmem:[%s182] sm:$0x1]
  %184 = vst [vmem:[%s2 + $0x21] sm:$0x1] %v183
  %s185 = sadd.s32 %s15, 34
  %s186 = sld [smem:[#allocation3 + %s185]]
  %s187 = scalar_lea.vmem %s1, %s186
  %v188 = vld [vmem:[%s187] sm:$0x1]
  %189 = vst [vmem:[%s2 + $0x22] sm:$0x1] %v188
  %s190 = sadd.s32 %s15, 35
  %s191 = sld [smem:[#allocation3 + %s190]]
  %s192 = scalar_lea.vmem %s1, %s191
  %v193 = vld [vmem:[%s192] sm:$0x1]
  %194 = vst [vmem:[%s2 + $0x23] sm:$0x1] %v193
  %s195 = sadd.s32 %s15, 36
  %s196 = sld [smem:[#allocation3 + %s195]]
  %s197 = scalar_lea.vmem %s1, %s196
  %v198 = vld [vmem:[%s197] sm:$0x1]
  %199 = vst [vmem:[%s2 + $0x24] sm:$0x1] %v198
  %s200 = sadd.s32 %s15, 37
  %s201 = sld [smem:[#allocation3 + %s200]]
  %s202 = scalar_lea.vmem %s1, %s201
  %v203 = vld [vmem:[%s202] sm:$0x1]
  %204 = vst [vmem:[%s2 + $0x25] sm:$0x1] %v203
  %s205 = sadd.s32 %s15, 38
  %s206 = sld [smem:[#allocation3 + %s205]]
  %s207 = scalar_lea.vmem %s1, %s206
  %v208 = vld [vmem:[%s207] sm:$0x1]
  %209 = vst [vmem:[%s2 + $0x26] sm:$0x1] %v208
  %s210 = sadd.s32 %s15, 39
  %s211 = sld [smem:[#allocation3 + %s210]]
  %s212 = scalar_lea.vmem %s1, %s211
  %v213 = vld [vmem:[%s212] sm:$0x1]
  %214 = vst [vmem:[%s2 + $0x27] sm:$0x1] %v213
  %s215 = sadd.s32 %s15, 40
  %s216 = sld [smem:[#allocation3 + %s215]]
  %s217 = scalar_lea.vmem %s1, %s216
  %v218 = vld [vmem:[%s217] sm:$0x1]
  %219 = vst [vmem:[%s2 + $0x28] sm:$0x1] %v218
  %s220 = sadd.s32 %s15, 41
  %s221 = sld [smem:[#allocation3 + %s220]]
  %s222 = scalar_lea.vmem %s1, %s221
  %v223 = vld [vmem:[%s222] sm:$0x1]
  %224 = vst [vmem:[%s2 + $0x29] sm:$0x1] %v223
  %s225 = sadd.s32 %s15, 42
  %s226 = sld [smem:[#allocation3 + %s225]]
  %s227 = scalar_lea.vmem %s1, %s226
  %v228 = vld [vmem:[%s227] sm:$0x1]
  %229 = vst [vmem:[%s2 + $0x2a] sm:$0x1] %v228
  %s230 = sadd.s32 %s15, 43
  %s231 = sld [smem:[#allocation3 + %s230]]
  %s232 = scalar_lea.vmem %s1, %s231
  %v233 = vld [vmem:[%s232] sm:$0x1]
  %234 = vst [vmem:[%s2 + $0x2b] sm:$0x1] %v233
  %s235 = sadd.s32 %s15, 44
  %s236 = sld [smem:[#allocation3 + %s235]]
  %s237 = scalar_lea.vmem %s1, %s236
  %v238 = vld [vmem:[%s237] sm:$0x1]
  %239 = vst [vmem:[%s2 + $0x2c] sm:$0x1] %v238
  %s240 = sadd.s32 %s15, 45
  %s241 = sld [smem:[#allocation3 + %s240]]
  %s242 = scalar_lea.vmem %s1, %s241
  %v243 = vld [vmem:[%s242] sm:$0x1]
  %244 = vst [vmem:[%s2 + $0x2d] sm:$0x1] %v243
  %s245 = sadd.s32 %s15, 46
  %s246 = sld [smem:[#allocation3 + %s245]]
  %s247 = scalar_lea.vmem %s1, %s246
  %v248 = vld [vmem:[%s247] sm:$0x1]
  %249 = vst [vmem:[%s2 + $0x2e] sm:$0x1] %v248
  %s250 = sadd.s32 %s15, 47
  %s251 = sld [smem:[#allocation3 + %s250]]
  %s252 = scalar_lea.vmem %s1, %s251
  %v253 = vld [vmem:[%s252] sm:$0x1]
  %254 = vst [vmem:[%s2 + $0x2f] sm:$0x1] %v253
  %s255 = sadd.s32 %s15, 48
  %s256 = sld [smem:[#allocation3 + %s255]]
  %s257 = scalar_lea.vmem %s1, %s256
  %v258 = vld [vmem:[%s257] sm:$0x1]
  %259 = vst [vmem:[%s2 + $0x30] sm:$0x1] %v258
  %s260 = sadd.s32 %s15, 49
  %s261 = sld [smem:[#allocation3 + %s260]]
  %s262 = scalar_lea.vmem %s1, %s261
  %v263 = vld [vmem:[%s262] sm:$0x1]
  %264 = vst [vmem:[%s2 + $0x31] sm:$0x1] %v263
  %s265 = sadd.s32 %s15, 50
  %s266 = sld [smem:[#allocation3 + %s265]]
  %s267 = scalar_lea.vmem %s1, %s266
  %v268 = vld [vmem:[%s267] sm:$0x1]
  %269 = vst [vmem:[%s2 + $0x32] sm:$0x1] %v268
  %s270 = sadd.s32 %s15, 51
  %s271 = sld [smem:[#allocation3 + %s270]]
  %s272 = scalar_lea.vmem %s1, %s271
  %v273 = vld [vmem:[%s272] sm:$0x1]
  %274 = vst [vmem:[%s2 + $0x33] sm:$0x1] %v273
  %s275 = sadd.s32 %s15, 52
  %s276 = sld [smem:[#allocation3 + %s275]]
  %s277 = scalar_lea.vmem %s1, %s276
  %v278 = vld [vmem:[%s277] sm:$0x1]
  %279 = vst [vmem:[%s2 + $0x34] sm:$0x1] %v278
  %s280 = sadd.s32 %s15, 53
  %s281 = sld [smem:[#allocation3 + %s280]]
  %s282 = scalar_lea.vmem %s1, %s281
  %v283 = vld [vmem:[%s282] sm:$0x1]
  %284 = vst [vmem:[%s2 + $0x35] sm:$0x1] %v283
  %s285 = sadd.s32 %s15, 54
  %s286 = sld [smem:[#allocation3 + %s285]]
  %s287 = scalar_lea.vmem %s1, %s286
  %v288 = vld [vmem:[%s287] sm:$0x1]
  %289 = vst [vmem:[%s2 + $0x36] sm:$0x1] %v288
  %s290 = sadd.s32 %s15, 55
  %s291 = sld [smem:[#allocation3 + %s290]]
  %s292 = scalar_lea.vmem %s1, %s291
  %v293 = vld [vmem:[%s292] sm:$0x1]
  %294 = vst [vmem:[%s2 + $0x37] sm:$0x1] %v293
  %s295 = sadd.s32 %s15, 56
  %s296 = sld [smem:[#allocation3 + %s295]]
  %s297 = scalar_lea.vmem %s1, %s296
  %v298 = vld [vmem:[%s297] sm:$0x1]
  %299 = vst [vmem:[%s2 + $0x38] sm:$0x1] %v298
  %s300 = sadd.s32 %s15, 57
  %s301 = sld [smem:[#allocation3 + %s300]]
  %s302 = scalar_lea.vmem %s1, %s301
  %v303 = vld [vmem:[%s302] sm:$0x1]
  %304 = vst [vmem:[%s2 + $0x39] sm:$0x1] %v303
  %s305 = sadd.s32 %s15, 58
  %s306 = sld [smem:[#allocation3 + %s305]]
  %s307 = scalar_lea.vmem %s1, %s306
  %v308 = vld [vmem:[%s307] sm:$0x1]
  %309 = vst [vmem:[%s2 + $0x3a] sm:$0x1] %v308
  %s310 = sadd.s32 %s15, 59
  %s311 = sld [smem:[#allocation3 + %s310]]
  %s312 = scalar_lea.vmem %s1, %s311
  %v313 = vld [vmem:[%s312] sm:$0x1]
  %314 = vst [vmem:[%s2 + $0x3b] sm:$0x1] %v313
  %s315 = sadd.s32 %s15, 60
  %s316 = sld [smem:[#allocation3 + %s315]]
  %s317 = scalar_lea.vmem %s1, %s316
  %v318 = vld [vmem:[%s317] sm:$0x1]
  %319 = vst [vmem:[%s2 + $0x3c] sm:$0x1] %v318
  %s320 = sadd.s32 %s15, 61
  %s321 = sld [smem:[#allocation3 + %s320]]
  %s322 = scalar_lea.vmem %s1, %s321
  %v323 = vld [vmem:[%s322] sm:$0x1]
  %324 = vst [vmem:[%s2 + $0x3d] sm:$0x1] %v323
  %s325 = sadd.s32 %s15, 62
  %s326 = sld [smem:[#allocation3 + %s325]]
  %s327 = scalar_lea.vmem %s1, %s326
  %v328 = vld [vmem:[%s327] sm:$0x1]
  %329 = vst [vmem:[%s2 + $0x3e] sm:$0x1] %v328
  %s330 = sadd.s32 %s15, 63
  %s331 = sld [smem:[#allocation3 + %s330]]
  %s332 = scalar_lea.vmem %s1, %s331
  %v333 = vld [vmem:[%s332] sm:$0x1]
  %334 = vst [vmem:[%s2 + $0x3f] sm:$0x1] %v333
  // Predicated region
  $region6: #{_selector_forward_impl.1} parent=0 // pred_check
    _
  $region7: #{_selector_forward_impl.1} parent=0 // pred_check_branch
    %336 = sbr.rel (0) target = $region9
  $region8: #{_selector_forward_impl.1} parent=0 // pred_region
    _
  $region9: #{_selector_forward_impl.1} parent=0 // pred_fallthru
    _
  // Predicated region
  $region10: #{_selector_forward_impl.1} parent=0 // pred_check
    _
  $region11: #{_selector_forward_impl.1} parent=0 // pred_check_branch
    %338 = sbr.rel (0) target = $region13
  $region12: #{_selector_forward_impl.1} parent=0 // pred_region
    _
  $region13: #{_selector_forward_impl.1} parent=0 // pred_fallthru
    _

</llo_original>
